<compile_context>
chip_gen: v5e
topology: v5e:2x2
jax: 0.10.0
libtpu: 0.0.40
codegen_flags: <defaults>
</compile_context>

<pallas_src>
import functools

import jax
import jax.numpy as jnp
from jax.experimental import pallas as pl
from jax.experimental.pallas import tpu as pltpu

EPS = 1e-5
EXPANSION = 4


def _vmem_limit_bytes():
    # Generation-aware VMEM budget with ~25% headroom for compiler scratch and the
    # double-buffered pipeline blocks (v7x: 64 MiB/TC -> 48 MiB; v5e/v6e: 128 -> 96 MiB).
    try:
        return int(pltpu.get_tpu_info().vmem_capacity_bytes) * 3 // 4
    except Exception:
        return 48 * 1024 * 1024


VMEM_LIMIT = _vmem_limit_bytes()


def _pick_block_m(m, target):
    """Largest row tile <= target that divides m and keeps sublane (8) alignment."""
    if m <= target:
        return m
    for bm in range(min(target, m), 7, -1):
        if bm % 8 == 0 and m % bm == 0:
            return bm
    # No aligned divisor <= target: fall back to the smallest aligned divisor so the
    # per-step VMEM stays bounded (instead of one whole-array block).
    for bm in range(8, m, 8):
        if m % bm == 0:
            return bm
    # TODO(synk): pad + mask ragged M instead of taking the whole array as one block.
    return m


def _bn_scale_shift(psum, pssq, gamma, beta, count):
    """Finalize BN: partial (sum, sum_sq) rows -> per-channel (scale, shift).

    Tiny (1, C) math in plain jnp so the Pallas grids that produced the partials can
    stay fully parallel across TensorCores.
    Note: var = E[x^2]-E[x]^2 in f32; fine here, use shifted/Welford sums if activation
    means ever become large relative to their spread.
    """
    s = jnp.sum(psum, axis=0)                       # (1, C)
    q = jnp.sum(pssq, axis=0)                       # (1, C)
    mean = s / count
    var = jnp.maximum(q / count - mean * mean, 0.0)
    scale = gamma.reshape(1, -1).astype(jnp.float32) * jax.lax.rsqrt(var + EPS)
    shift = beta.reshape(1, -1).astype(jnp.float32) - mean * scale
    return scale, shift


# --------------------------------------------------------------------------------------
# K1 / K3: 1x1 conv (channel matmul) + per-block partial BN statistics.
# Optionally fuses the previous layer's BN apply (+ReLU) into the input read.
# --------------------------------------------------------------------------------------
def _matmul_stats_kernel(*refs, input_affine, input_relu):
    if input_affine:
        x_ref, iscale_ref, ishift_ref, w_ref, y_ref, psum_ref, pssq_ref = refs
    else:
        x_ref, w_ref, y_ref, psum_ref, pssq_ref = refs

    x = x_ref[...].astype(jnp.float32)
    if input_affine:
        x = x * iscale_ref[...] + ishift_ref[...]
    if input_relu:
        x = jnp.maximum(x, 0.0)

    # 1x1 conv == channel matmul; bf16 operands on the MXU, f32 accumulation.
    acc = jnp.dot(x.astype(jnp.bfloat16), w_ref[...],
                  preferred_element_type=jnp.float32)
    y_ref[...] = acc.astype(y_ref.dtype)

    # Per-block partial BN statistics (reduced outside -> grid can stay "parallel").
    psum_ref[0] = jnp.sum(acc, axis=0, keepdims=True)
    pssq_ref[0] = jnp.sum(acc * acc, axis=0, keepdims=True)


def matmul_partial_stats(x2d, w, iscale=None, ishift=None, *, input_relu=False,
                         block_m=512, out_dtype=jnp.bfloat16):
    M, K = x2d.shape
    C = w.shape[1]
    bm = _pick_block_m(M, block_m)
    G = M // bm
    input_affine = iscale is not None

    in_specs = [pl.BlockSpec((bm, K), lambda i: (i, 0))]
    args = [x2d]
    if input_affine:
        vec_k = pl.BlockSpec((1, K), lambda i: (0, 0))
        in_specs += [vec_k, vec_k]
        args += [iscale, ishift]
    in_specs.append(pl.BlockSpec((K, C), lambda i: (0, 0)))
    args.append(w)

    kernel = functools.partial(_matmul_stats_kernel,
                               input_affine=input_affine, input_relu=input_relu)
    stat_spec = pl.BlockSpec((1, 1, C), lambda i: (i, 0, 0))
    stat_shape = jax.ShapeDtypeStruct((G, 1, C), jnp.float32)
    return pl.pallas_call(
        kernel,
        grid=(G,),
        in_specs=in_specs,
        out_specs=(pl.BlockSpec((bm, C), lambda i: (i, 0)), stat_spec, stat_spec),
        out_shape=(jax.ShapeDtypeStruct((M, C), out_dtype), stat_shape, stat_shape),
        compiler_params=pltpu.CompilerParams(
            dimension_semantics=("parallel",), vmem_limit_bytes=VMEM_LIMIT),
        cost_estimate=pl.CostEstimate(
            flops=2 * M * K * C, transcendentals=0,
            bytes_accessed=int(x2d.dtype.itemsize) * M * K + 2 * K * C
                           + 2 * M * C + 8 * G * C),
    )(*args)


# --------------------------------------------------------------------------------------
# K2: 3x3 conv (stride, pad=1) from a bf16 VMEM halo scratch (no HBM im2col).
# bn1+relu fused on the input read; per-image partial bn2 stats; optional projection
# shortcut (1x1 strided conv on the pre-subsampled input + its partial stats) fused in.
# --------------------------------------------------------------------------------------
def _conv3x3_stats_kernel(*refs, stride, H, W, Ho, Wo, has_proj):
    if has_proj:
        (y1_ref, s1_ref, h1_ref, w2_ref, xs_ref, ws_ref,
         y2_ref, psum2_ref, pssq2_ref, sc_ref, psums_ref, pssqs_ref,
         xpad_ref) = refs
    else:
        (y1_ref, s1_ref, h1_ref, w2_ref,
         y2_ref, psum2_ref, pssq2_ref, xpad_ref) = refs

    C1 = y1_ref.shape[3]
    C2 = w2_ref.shape[2]

    # Zero the 1-pixel halo every step: the grid is "parallel" (per-core scratch), so
    # we cannot rely on a pid==0 init.  Border-only stores keep this cheap.
    zrow = jnp.zeros((1, W + 2, C1), jnp.bfloat16)
    zcol = jnp.zeros((H + 2, 1, C1), jnp.bfloat16)
    xpad_ref[0:1, :, :] = zrow
    xpad_ref[H + 1:H + 2, :, :] = zrow
    xpad_ref[:, 0:1, :] = zcol
    xpad_ref[:, W + 1:W + 2, :] = zcol

    # bn1 + relu fused on the conv1-output read; interior of the bf16 halo scratch.
    xn = y1_ref[0].astype(jnp.float32) * s1_ref[...] + h1_ref[...]
    xpad_ref[1:H + 1, 1:W + 1, :] = jnp.maximum(xn, 0.0).astype(jnp.bfloat16)

    def tap(kh, kw):
        if stride == 1:
            return xpad_ref[kh:kh + Ho, kw:kw + Wo, :]
        # Strided tap WITHOUT strided ref indexing: contiguous read, then subsample via
        # reshape + static index on the loaded value (avoids the gather/TypedInt path).
        region = xpad_ref[kh:kh + stride * Ho, kw:kw + stride * Wo, :]
        region = region.reshape(Ho, stride, stride * Wo, C1)[:, 0, :, :]
        return region.reshape(Ho, Wo, stride, C1)[:, :, 0, :]

    # 3x3 conv = 3 matmuls with contraction K = 3*C1 (per-kh tap concat).
    acc = jnp.zeros((Ho * Wo, C2), jnp.float32)
    for kh in range(3):
        slab = jnp.concatenate([tap(kh, 0), tap(kh, 1), tap(kh, 2)], axis=-1)
        acc += jnp.dot(slab.reshape(Ho * Wo, 3 * C1), w2_ref[kh],
                       preferred_element_type=jnp.float32)
    y2_ref[0] = acc.astype(y2_ref.dtype)
    psum2_ref[0] = jnp.sum(acc, axis=0, keepdims=True)
    pssq2_ref[0] = jnp.sum(acc * acc, axis=0, keepdims=True)

    if has_proj:
        cin = ws_ref.shape[0]
        # Shortcut input was spatially pre-subsampled (and cast to bf16) outside.
        xs = xs_ref[0].reshape(Ho * Wo, cin)
        sc = jnp.dot(xs, ws_ref[...], preferred_element_type=jnp.float32)
        sc_ref[0] = sc.astype(sc_ref.dtype)
        psums_ref[0] = jnp.sum(sc, axis=0, keepdims=True)
        pssqs_ref[0] = jnp.sum(sc * sc, axis=0, keepdims=True)


def conv3x3_partial_stats(y1_4d, s1, h1, w2_stacked, xs4d, ws, *, stride, Ho, Wo):
    N, H, W, C1 = y1_4d.shape
    C2 = w2_stacked.shape[2]
    has_proj = xs4d is not None

    def vec(c):
        return pl.BlockSpec((1, c), lambda n: (0, 0))

    in_specs = [pl.BlockSpec((1, H, W, C1), lambda n: (n, 0, 0, 0)),
                vec(C1), vec(C1),
                pl.BlockSpec((3, 3 * C1, C2), lambda n: (0, 0, 0))]
    args = [y1_4d, s1, h1, w2_stacked]

    stat2_spec = pl.BlockSpec((1, 1, C2), lambda n: (n, 0, 0))
    stat2_shape = jax.ShapeDtypeStruct((N, 1, C2), jnp.float32)
    out_specs = [pl.BlockSpec((1, Ho * Wo, C2), lambda n: (n, 0, 0)),
                 stat2_spec, stat2_spec]
    out_shape = [jax.ShapeDtypeStruct((N, Ho * Wo, C2), jnp.bfloat16),
                 stat2_shape, stat2_shape]

    flops = 2 * N * Ho * Wo * 9 * C1 * C2
    bytes_acc = 2 * N * H * W * C1 + 2 * 9 * C1 * C2 + 2 * N * Ho * Wo * C2 + 8 * N * C2

    if has_proj:
        Cin = xs4d.shape[3]
        C3 = ws.shape[1]
        in_specs += [pl.BlockSpec((1, Ho, Wo, Cin), lambda n: (n, 0, 0, 0)),
                     pl.BlockSpec((Cin, C3), lambda n: (0, 0))]
        args += [xs4d, ws]
        stat3_spec = pl.BlockSpec((1, 1, C3), lambda n: (n, 0, 0))
        stat3_shape = jax.ShapeDtypeStruct((N, 1, C3), jnp.float32)
        out_specs += [pl.BlockSpec((1, Ho * Wo, C3), lambda n: (n, 0, 0)),
                      stat3_spec, stat3_spec]
        out_shape += [jax.ShapeDtypeStruct((N, Ho * Wo, C3), jnp.bfloat16),
                      stat3_shape, stat3_shape]
        flops += 2 * N * Ho * Wo * Cin * C3
        bytes_acc += 2 * N * Ho * Wo * Cin + 2 * Cin * C3 + 2 * N * Ho * Wo * C3 + 8 * N * C3

    kernel = functools.partial(_conv3x3_stats_kernel, stride=stride, H=H, W=W,
                               Ho=Ho, Wo=Wo, has_proj=has_proj)
    # TODO(synk): for large spatial extents (e.g. 56x56, C1=256) also tile over output
    # rows (grid=(N, Ho//rows) with a (rows*stride+2, W+2, C1) halo) to bound per-step
    # VMEM and deepen the pipeline; and pad channels toward 128 for lane-dense stores.
    return pl.pallas_call(
        kernel,
        grid=(N,),
        in_specs=in_specs,
        out_specs=tuple(out_specs),
        out_shape=tuple(out_shape),
        scratch_shapes=[pltpu.VMEM((H + 2, W + 2, C1), jnp.bfloat16)],
        compiler_params=pltpu.CompilerParams(
            dimension_semantics=("parallel",), vmem_limit_bytes=VMEM_LIMIT),
        cost_estimate=pl.CostEstimate(flops=flops, transcendentals=0,
                                      bytes_accessed=bytes_acc),
    )(*args)


# --------------------------------------------------------------------------------------
# K4: bn3 apply + shortcut-bn apply + residual add + relu (preact only when requested).
# --------------------------------------------------------------------------------------
def _bn_add_relu_kernel(*refs, emit_preact):
    if emit_preact:
        y3_ref, sc_ref, s3_ref, h3_ref, ss_ref, hs_ref, out_ref, pre_ref = refs
    else:
        y3_ref, sc_ref, s3_ref, h3_ref, ss_ref, hs_ref, out_ref = refs
    p = (y3_ref[...].astype(jnp.float32) * s3_ref[...] + h3_ref[...]
         + sc_ref[...].astype(jnp.float32) * ss_ref[...] + hs_ref[...])
    if emit_preact:
        pre_ref[...] = p.astype(pre_ref.dtype)
    out_ref[...] = jnp.maximum(p, 0.0).astype(out_ref.dtype)


def bn_add_relu(y3, sc, s3, h3, ss, hs, *, emit_preact, block_m):
    M, C = y3.shape
    bm = _pick_block_m(M, block_m)
    row = pl.BlockSpec((bm, C), lambda i: (i, 0))
    vec = pl.BlockSpec((1, C), lambda i: (0, 0))
    sds = jax.ShapeDtypeStruct((M, C), jnp.float32)
    kernel = functools.partial(_bn_add_relu_kernel, emit_preact=emit_preact)
    out_shape = (sds, sds) if emit_preact else sds
    out_specs = (row, row) if emit_preact else row
    nbytes = (int(y3.dtype.itemsize) * M * C + int(sc.dtype.itemsize) * M * C
              + (8 if emit_preact else 4) * M * C)
    return pl.pallas_call(
        kernel,
        grid=(M // bm,),
        in_specs=[row, row, vec, vec, vec, vec],
        out_specs=out_specs,
        out_shape=out_shape,
        compiler_params=pltpu.CompilerParams(
            dimension_semantics=("parallel",), vmem_limit_bytes=VMEM_LIMIT),
        cost_estimate=pl.CostEstimate(flops=6 * M * C, transcendentals=0,
                                      bytes_accessed=nbytes),
    )(y3, sc, s3, h3, ss, hs)


# --------------------------------------------------------------------------------------
# Bottleneck forward
# --------------------------------------------------------------------------------------
def init_bottleneck_params(key, in_planes, planes, stride):
    """Synthetic params, conv weights stored in matmul form (w2 as (9, Cin, Cout))."""
    cout = EXPANSION * planes
    ks = jax.random.split(key, 10)
    p = {
        "w1": jax.random.normal(ks[0], (in_planes, planes), jnp.float32) * 0.1,
        "g1": jax.random.uniform(ks[1], (planes,), jnp.float32, 0.5, 1.5),
        "b1": jax.random.normal(ks[2], (planes,), jnp.float32) * 0.1,
        "w2": jax.random.normal(ks[3], (9, planes, planes), jnp.float32) * 0.1,
        "g2": jax.random.uniform(ks[4], (planes,), jnp.float32, 0.5, 1.5),
        "b2": jax.random.normal(ks[5], (planes,), jnp.float32) * 0.1,
        "w3": jax.random.normal(ks[6], (planes, cout), jnp.float32) * 0.1,
        "g3": jax.random.uniform(ks[7], (cout,), jnp.float32, 0.5, 1.5),
        "b3": jax.random.normal(ks[8], (cout,), jnp.float32) * 0.1,
    }
    if stride != 1 or in_planes != cout:
        ks2 = jax.random.split(ks[9], 3)
        p["ws"] = jax.random.normal(ks2[0], (in_planes, cout), jnp.float32) * 0.1
        p["gs"] = jax.random.uniform(ks2[1], (cout,), jnp.float32, 0.5, 1.5)
        p["bs"] = jax.random.normal(ks2[2], (cout,), jnp.float32) * 0.1
    return p


def bottleneck_forward(x, params, *, stride, is_last, block_m=512):
    """x: (N, H, W, Cin) NHWC float32. Matches Bottleneck.forward with training-mode BN."""
    N, H, W, Cin = x.shape
    planes = params["w1"].shape[1]
    cout = EXPANSION * planes
    Ho = (H - 1) // stride + 1
    Wo = (W - 1) // stride + 1
    M1 = N * H * W
    M2 = N * Ho * Wo
    has_proj = (stride != 1) or (Cin != cout)
    bf16 = jnp.bfloat16

    # K1: conv1 (1x1) raw bf16 output + partial bn1 stats (no identity input affine).
    y1, p1s, p1q = matmul_partial_stats(x.reshape(M1, Cin), params["w1"].astype(bf16),
                                        block_m=block_m)
    s1, h1 = _bn_scale_shift(p1s, p1q, params["g1"], params["b1"], M1)

    # K2: 3x3 conv (stride, pad=1) with bn1+relu fused on its input + partial bn2 stats;
    # projection shortcut (1x1 conv on the pre-subsampled input + its stats) fused in.
    w2_stacked = params["w2"].reshape(3, 3 * planes, planes).astype(bf16)
    if has_proj:
        xs4d = (x[:, ::stride, ::stride, :] if stride != 1 else x).astype(bf16)
        ws = params["ws"].astype(bf16)
    else:
        xs4d, ws = None, None
    res = conv3x3_partial_stats(y1.reshape(N, H, W, planes), s1, h1, w2_stacked,
                                xs4d, ws, stride=stride, Ho=Ho, Wo=Wo)
    if has_proj:
        y2, p2s, p2q, sc_raw, pss, psq = res
        sc2d = sc_raw.reshape(M2, cout)
        ss, hs = _bn_scale_shift(pss, psq, params["gs"], params["bs"], M2)
    else:
        y2, p2s, p2q = res
        sc2d = x.reshape(M2, cout)                 # identity shortcut (f32)
        ss = jnp.ones((1, cout), jnp.float32)
        hs = jnp.zeros((1, cout), jnp.float32)
    s2, h2 = _bn_scale_shift(p2s, p2q, params["g2"], params["b2"], M2)

    # K3: conv3 (1x1) with bn2+relu fused on its input + partial bn3 stats.
    y3, p3s, p3q = matmul_partial_stats(y2.reshape(M2, planes),
                                        params["w3"].astype(bf16),
                                        iscale=s2, ishift=h2, input_relu=True,
                                        block_m=block_m)
    s3, h3 = _bn_scale_shift(p3s, p3q, params["g3"], params["b3"], M2)

    # K4: bn3 apply + shortcut-bn apply + residual add + relu (f32 outputs).
    res = bn_add_relu(y3, sc2d, s3, h3, ss, hs, emit_preact=is_last, block_m=block_m)
    if is_last:
        out, preact = res
        return out.reshape(N, Ho, Wo, cout), preact.reshape(N, Ho, Wo, cout)
    return res.reshape(N, Ho, Wo, cout)


# --------------------------------------------------------------------------------------
# Pure-JAX reference
# --------------------------------------------------------------------------------------
def _bn_ref(y, g, b):
    mean = jnp.mean(y, axis=(0, 1, 2), keepdims=True)
    var = jnp.mean((y - mean) ** 2, axis=(0, 1, 2), keepdims=True)
    return (y - mean) * jax.lax.rsqrt(var + EPS) * g + b


def bottleneck_ref(x, params, *, stride, is_last):
    dn = ("NHWC", "HWIO", "NHWC")
    N, H, W, Cin = x.shape
    planes = params["w1"].shape[1]
    cout = EXPANSION * planes
    w1 = params["w1"].reshape(1, 1, Cin, planes)
    w2 = params["w2"].reshape(3, 3, planes, planes)
    w3 = params["w3"].reshape(1, 1, planes, cout)

    o = jax.lax.conv_general_dilated(x, w1, (1, 1), "VALID", dimension_numbers=dn)
    o = jax.nn.relu(_bn_ref(o, params["g1"], params["b1"]))
    o = jax.lax.conv_general_dilated(o, w2, (stride, stride), ((1, 1), (1, 1)),
                                     dimension_numbers=dn)
    o = jax.nn.relu(_bn_ref(o, params["g2"], params["b2"]))
    o = jax.lax.conv_general_dilated(o, w3, (1, 1), "VALID", dimension_numbers=dn)
    o = _bn_ref(o, params["g3"], params["b3"])

    if stride != 1 or Cin != cout:
        ws = params["ws"].reshape(1, 1, Cin, cout)
        sc = jax.lax.conv_general_dilated(x, ws, (stride, stride), "VALID",
                                          dimension_numbers=dn)
        sc = _bn_ref(sc, params["gs"], params["bs"])
    else:
        sc = x
    preact = o + sc
    out = jax.nn.relu(preact)
    return (out, preact) if is_last else out


# --------------------------------------------------------------------------------------
if __name__ == "__main__":
    key = jax.random.PRNGKey(0)
    k1, k2, k3, k4 = jax.random.split(key, 4)

    # Config A: projection shortcut, stride=2, is_last=True.
    N, H, W = 2, 16, 16
    in_planes, planes, stride = 16, 8, 2
    x = jax.random.normal(k1, (N, H, W, in_planes), jnp.float32)
    params = init_bottleneck_params(k2, in_planes, planes, stride)
    out, preact = bottleneck_forward(x, params, stride=stride, is_last=True, block_m=128)
    out = jax.block_until_ready(out)
    preact = jax.block_until_ready(preact)
    ref_out, ref_preact = bottleneck_ref(x, params, stride=stride, is_last=True)
    assert out.shape == (N, H // stride, W // stride, EXPANSION * planes)
    assert preact.shape == out.shape
    assert bool(jnp.allclose(out, ref_out, rtol=5e-2, atol=5e-2))
    assert bool(jnp.allclose(preact, ref_preact, rtol=5e-2, atol=5e-2))

    # Config B: identity shortcut (stride=1, in_planes == 4*planes), is_last=False.
    in_planes2, planes2, stride2 = 32, 8, 1
    x2 = jax.random.normal(k3, (N, H, W, in_planes2), jnp.float32)
    params2 = init_bottleneck_params(k4, in_planes2, planes2, stride2)
    out2 = bottleneck_forward(x2, params2, stride=stride2, is_last=False, block_m=128)
    out2 = jax.block_until_ready(out2)
    ref_out2 = bottleneck_ref(x2, params2, stride=stride2, is_last=False)
    assert out2.shape == (N, H, W, EXPANSION * planes2)
    assert bool(jnp.allclose(out2, ref_out2, rtol=5e-2, atol=5e-2))

    print("KERNEL_OK")
</pallas_src>

<mosaic_0001>
module attributes {stable_mosaic.version = 11 : i64} {
  func.func @_matmul_stats_kernel(%arg0: i32, %arg1: memref<128x16xf32, #tpu.memory_space<vmem>>, %arg2: memref<16x8xbf16, #tpu.memory_space<vmem>>, %arg3: memref<128x8xbf16, #tpu.memory_space<vmem>>, %arg4: memref<1x1x8xf32, #tpu.memory_space<vmem>>, %arg5: memref<1x1x8xf32, #tpu.memory_space<vmem>>) attributes {dimension_semantics = [#tpu.dimension_semantics<parallel>], iteration_bounds = array<i64: 4>, scalar_prefetch = 0 : i64, scratch_operands = 0 : i64, tpu.core_type = #tpu.core_type<tc>, window_params = [{transform_indices = @transform_0, window_bounds = array<i64: 128, 16>}, {pipeline_mode = #tpu.pipeline_mode<synchronous>, transform_indices = @transform_1, window_bounds = array<i64: 16, 8>}, {transform_indices = @transform_2, window_bounds = array<i64: 128, 8>}, {transform_indices = @transform_3, window_bounds = array<i64: 1, 1, 8>}, {transform_indices = @transform_4, window_bounds = array<i64: 1, 1, 8>}]} {
    %c0 = arith.constant 0 : index
    %c0_0 = arith.constant 0 : index
    %0 = vector.load %arg1[%c0, %c0_0] : memref<128x16xf32, #tpu.memory_space<vmem>>, vector<128x16xf32>
    %1 = arith.truncf %0 : vector<128x16xf32> to vector<128x16xbf16>
    %c0_1 = arith.constant 0 : index
    %c0_2 = arith.constant 0 : index
    %2 = vector.load %arg2[%c0_1, %c0_2] : memref<16x8xbf16, #tpu.memory_space<vmem>>, vector<16x8xbf16>
    %cst = arith.constant dense<0.000000e+00> : vector<128x8xf32>
    %3 = tpu.matmul %1, %2, %cst {dimension_numbers = #tpu.dot_dimension_numbers<[1], [0], [0], [1], [0, 0, 1, 1], [], []>} : vector<128x16xbf16>, vector<16x8xbf16>, vector<128x8xf32> -> vector<128x8xf32>
    %4 = arith.truncf %3 : vector<128x8xf32> to vector<128x8xbf16>
    %c0_3 = arith.constant 0 : index
    %c0_4 = arith.constant 0 : index
    %5 = vector.load %arg3[%c0_3, %c0_4] : memref<128x8xbf16, #tpu.memory_space<vmem>>, vector<128x8xbf16>
    tpu.vector_store %arg3[%c0_3, %c0_4], %4 {strides = array<i32>} : memref<128x8xbf16, #tpu.memory_space<vmem>>, vector<128x8xbf16>,
    %cst_5 = arith.constant dense<0.000000e+00> : vector<8xf32>
    %6 = vector.multi_reduction <add>, %3, %cst_5 [0] : vector<128x8xf32> to vector<8xf32>
    %7 = vector.shape_cast %6 : vector<8xf32> to vector<1x8xf32>
    %c0_6 = arith.constant 0 : index
    %c0_7 = arith.constant 0 : index
    %c0_8 = arith.constant 0 : index
    %8 = vector.load %arg4[%c0_6, %c0_7, %c0_8] : memref<1x1x8xf32, #tpu.memory_space<vmem>>, vector<1x1x8xf32>
    %9 = vector.shape_cast %8 : vector<1x1x8xf32> to vector<1x8xf32>
    %10 = vector.shape_cast %7 : vector<1x8xf32> to vector<1x1x8xf32>
    tpu.vector_store %arg4[%c0_6, %c0_7, %c0_8], %10 {strides = array<i32>} : memref<1x1x8xf32, #tpu.memory_space<vmem>>, vector<1x1x8xf32>,
    %11 = arith.mulf %3, %3 : vector<128x8xf32>
    %cst_9 = arith.constant dense<0.000000e+00> : vector<8xf32>
    %12 = vector.multi_reduction <add>, %11, %cst_9 [0] : vector<128x8xf32> to vector<8xf32>
    %13 = vector.shape_cast %12 : vector<8xf32> to vector<1x8xf32>
    %c0_10 = arith.constant 0 : index
    %c0_11 = arith.constant 0 : index
    %c0_12 = arith.constant 0 : index
    %14 = vector.load %arg5[%c0_10, %c0_11, %c0_12] : memref<1x1x8xf32, #tpu.memory_space<vmem>>, vector<1x1x8xf32>
    %15 = vector.shape_cast %14 : vector<1x1x8xf32> to vector<1x8xf32>
    %16 = vector.shape_cast %13 : vector<1x8xf32> to vector<1x1x8xf32>
    tpu.vector_store %arg5[%c0_10, %c0_11, %c0_12], %16 {strides = array<i32>} : memref<1x1x8xf32, #tpu.memory_space<vmem>>, vector<1x1x8xf32>,
    return
  }
  func.func @transform_0(%arg0: i32) -> (i32, i32) {
    %c0_i32 = arith.constant 0 : i32
    %c0_i32_0 = arith.constant 0 : i32
    return %arg0, %c0_i32 : i32, i32
  }
  func.func @transform_1(%arg0: i32) -> (i32, i32) {
    %c0_i32 = arith.constant 0 : i32
    %c0_i32_0 = arith.constant 0 : i32
    %c0_i32_1 = arith.constant 0 : i32
    return %c0_i32, %c0_i32_0 : i32, i32
  }
  func.func @transform_2(%arg0: i32) -> (i32, i32) {
    %c0_i32 = arith.constant 0 : i32
    %c0_i32_0 = arith.constant 0 : i32
    return %arg0, %c0_i32 : i32, i32
  }
  func.func @transform_3(%arg0: i32) -> (i32, i32, i32) {
    %c0_i32 = arith.constant 0 : i32
    %c0_i32_0 = arith.constant 0 : i32
    %c0_i32_1 = arith.constant 0 : i32
    return %arg0, %c0_i32, %c0_i32_0 : i32, i32, i32
  }
  func.func @transform_4(%arg0: i32) -> (i32, i32, i32) {
    %c0_i32 = arith.constant 0 : i32
    %c0_i32_0 = arith.constant 0 : i32
    %c0_i32_1 = arith.constant 0 : i32
    return %arg0, %c0_i32, %c0_i32_0 : i32, i32, i32
  }
}

</mosaic_0001>

<llo_original>
// kernel: tpu_custom_call.1
$region0: #{tpu_custom_call.1}
  #allocation0 [shape = 'u32[]', space=smem, size = 0x4, offset = 0x4, fixed_abs, tag = 'smem constant byte address 0x4 - core index']
  #allocation1 [shape = 'u32[72,128]{1,0:T(1,128)}', space=vmem, size = 0x9000, scoped, tag = 'internal scratch']
  %s0 = inlined_call_operand.vmem [shape: f32[512,16], index: 0, kind: input, shape index: {}]
  %s1 = inlined_call_operand.vmem [shape: bf16[16,8], index: 1, kind: input, shape index: {}]
  %s2 = inlined_call_operand.vmem [shape: bf16[512,8], index: 2, kind: output, shape index: {0}]
  %s3 = inlined_call_operand.hbm [shape: f32[4,1,8], index: 3, kind: output, shape index: {1}]
  %s4 = inlined_call_operand.hbm [shape: f32[4,1,8], index: 4, kind: output, shape index: {2}]
  %5 = xla_tuple %s2, %s3, %s4
  %s6 = sld [smem:[#allocation0]]
  $region57: #{tpu_custom_call.1} parent=0
    _
  %s8 = ssub.s32 1, %s6
  %s9 = scalar_select 0, %s8, %s6
  $region1: #{tpu_custom_call.1} parent=0
    #allocation2 [shape = 'u8[1024]{0}', space=vmem, size = 0x400, scoped, tag = 'output window, operand 1']
    #allocation3 [shape = 's32[2]{0}', space=sflag, size = 0x8, scoped, tag = 'scoped memory for tpu_custom_call.1']
    #allocation4 [shape = 'u8[1024]{0}', space=vmem, size = 0x400, scoped, tag = 'output window, operand 2']
    #allocation5 [shape = 's32[2]{0}', space=sflag, size = 0x8, scoped, tag = 'scoped memory for tpu_custom_call.1']
    %10 = vsyncpa [#allocation3], 0
    %s11 = scalar_lea.sflag [#allocation3], 1
    %12 = vsyncpa %s11, 0
    %13 = vsyncpa [#allocation5], 0
    %s14 = scalar_lea.sflag [#allocation5], 1
    %15 = vsyncpa %s14, 0
    loop: start=0, step=1, limit=6
    $region2: #{tpu_custom_call.1} parent=1 // loop_pre_header
      _
    $region3: #{tpu_custom_call.1} parent=1 // loop_header
      %s17 = sphi 0, %s21
      %p18 = scmp.ge.s32.totalorder %s17, 6
      %s27 = sphi 0, %s29
      %s30 = sphi 0, %s27
      %s31 = sphi 0, %s30
      %s47 = sphi 0, %s31
      %s51 = sphi 0, %s51
      %s53 = sphi 0, %s51
      %s54 = sphi 0, %s53
      %s68 = sphi 0, %s54
      %s74 = sphi 0, %s76
      %s77 = sphi 0, %s74
      %s78 = sphi 0, %s77
      %s94 = sphi 0, %s78
      %s100 = sphi 0, %s102
      %s103 = sphi 0, %s100
      %s104 = sphi 0, %s103
      %s120 = sphi 0, %s104
      %s126 = sphi 0, %s128
      %s129 = sphi 0, %s126
      %s130 = sphi 0, %s129
      %s146 = sphi 0, %s130
    $region4: #{tpu_custom_call.1} parent=1 // loop_header_branch
      %20 = sbr.rel (%p18) target = $region8
    $region5: #{tpu_custom_call.1} parent=1 // loop_body
      %s22 = ssub.s32 %s17, 1
      %s23 = ssub.s32 %s17, 2
      %s24 = sadd.s32 %s17, 1
      %s25 = ssub.s32 %s17, %s24
      %p26 = scmp.eq.s32.totalorder %s25, 0
      %s28 = sadd.s32 %s27, 1
      %s29 = scalar_select %p26, %s27, %s28
      %p32 = pneg %p26
      %p33 = scmp.eq.s32.totalorder %s17, 3
      %p34 = por %p32, %p33
      %p35 = scmp.ne.s32.totalorder %s27, %s30
      %p36 = scmp.eq.s32.totalorder %s17, 0
      %p37 = por %p35, %p36
      %p38 = scmp.ne.s32.totalorder %s27, %s30
      %p39 = scmp.eq.s32.totalorder %s22, 3
      %p40 = por %p38, %p39
      %p41 = scmp.ne.s32.totalorder %s30, %s31
      %p42 = scmp.eq.s32.totalorder %s22, 0
      %p43 = por %p41, %p42
      %p44 = scmp.ne.s32.totalorder %s30, %s31
      %p45 = scmp.eq.s32.totalorder %s23, 3
      %p46 = por %p44, %p45
      %p48 = scmp.ne.s32.totalorder %s31, %s47
      %p49 = scmp.eq.s32.totalorder %s23, 0
      %p50 = por %p48, %p49
      %s52 = sadd.s32 %s51, 1
      %p55 = scmp.eq.s32.totalorder %s17, 3
      %p56 = scmp.ne.s32.totalorder %s51, %s53
      %p57 = scmp.eq.s32.totalorder %s17, 0
      %p58 = por %p56, %p57
      %p59 = scmp.ne.s32.totalorder %s51, %s53
      %p60 = scmp.eq.s32.totalorder %s22, 3
      %p61 = por %p59, %p60
      %p62 = scmp.ne.s32.totalorder %s53, %s54
      %p63 = scmp.eq.s32.totalorder %s22, 0
      %p64 = por %p62, %p63
      %p65 = scmp.ne.s32.totalorder %s53, %s54
      %p66 = scmp.eq.s32.totalorder %s23, 3
      %p67 = por %p65, %p66
      %p69 = scmp.ne.s32.totalorder %s54, %s68
      %p70 = scmp.eq.s32.totalorder %s23, 0
      %p71 = por %p69, %p70
      %s72 = ssub.s32 %s17, %s24
      %p73 = scmp.eq.s32.totalorder %s72, 0
      %s75 = sadd.s32 %s74, 1
      %s76 = scalar_select %p73, %s74, %s75
      %p79 = pneg %p73
      %p80 = scmp.eq.s32.totalorder %s17, 3
      %p81 = por %p79, %p80
      %p82 = scmp.ne.s32.totalorder %s74, %s77
      %p83 = scmp.eq.s32.totalorder %s17, 0
      %p84 = por %p82, %p83
      %p85 = scmp.ne.s32.totalorder %s74, %s77
      %p86 = scmp.eq.s32.totalorder %s22, 3
      %p87 = por %p85, %p86
      %p88 = scmp.ne.s32.totalorder %s77, %s78
      %p89 = scmp.eq.s32.totalorder %s22, 0
      %p90 = por %p88, %p89
      %p91 = scmp.ne.s32.totalorder %s77, %s78
      %p92 = scmp.eq.s32.totalorder %s23, 3
      %p93 = por %p91, %p92
      %p95 = scmp.ne.s32.totalorder %s78, %s94
      %p96 = scmp.eq.s32.totalorder %s23, 0
      %p97 = por %p95, %p96
      %s98 = ssub.s32 %s17, %s24
      %p99 = scmp.eq.s32.totalorder %s98, 0
      %s101 = sadd.s32 %s100, 1
      %s102 = scalar_select %p99, %s100, %s101
      %p105 = pneg %p99
      %p106 = scmp.eq.s32.totalorder %s17, 3
      %p107 = por %p105, %p106
      %p108 = scmp.ne.s32.totalorder %s100, %s103
      %p109 = scmp.eq.s32.totalorder %s17, 0
      %p110 = por %p108, %p109
      %p111 = scmp.ne.s32.totalorder %s100, %s103
      %p112 = scmp.eq.s32.totalorder %s22, 3
      %p113 = por %p111, %p112
      %p114 = scmp.ne.s32.totalorder %s103, %s104
      %p115 = scmp.eq.s32.totalorder %s22, 0
      %p116 = por %p114, %p115
      %p117 = scmp.ne.s32.totalorder %s103, %s104
      %p118 = scmp.eq.s32.totalorder %s23, 3
      %p119 = por %p117, %p118
      %p121 = scmp.ne.s32.totalorder %s104, %s120
      %p122 = scmp.eq.s32.totalorder %s23, 0
      %p123 = por %p121, %p122
      %s124 = ssub.s32 %s17, %s24
      %p125 = scmp.eq.s32.totalorder %s124, 0
      %s127 = sadd.s32 %s126, 1
      %s128 = scalar_select %p125, %s126, %s127
      %p131 = pneg %p125
      %p132 = scmp.eq.s32.totalorder %s17, 3
      %p133 = por %p131, %p132
      %p134 = scmp.ne.s32.totalorder %s126, %s129
      %p135 = scmp.eq.s32.totalorder %s17, 0
      %p136 = por %p134, %p135
      %p137 = scmp.ne.s32.totalorder %s126, %s129
      %p138 = scmp.eq.s32.totalorder %s22, 3
      %p139 = por %p137, %p138
      %p140 = scmp.ne.s32.totalorder %s129, %s130
      %p141 = scmp.eq.s32.totalorder %s22, 0
      %p142 = por %p140, %p141
      %p143 = scmp.ne.s32.totalorder %s129, %s130
      %p144 = scmp.eq.s32.totalorder %s23, 3
      %p145 = por %p143, %p144
      %p147 = scmp.ne.s32.totalorder %s130, %s146
      %p148 = scmp.eq.s32.totalorder %s23, 0
      %p149 = por %p147, %p148
      %p150 = scmp.le.s32.totalorder 1, %s17
      %p151 = scmp.lt.s32.totalorder %s17, 5
      %p152 = pnand %p150, %p151
      %p153 = pneg %p152
      // Predicated region
      $region9: #{tpu_custom_call.1} parent=5 // pred_check
        _
      $region10: #{tpu_custom_call.1} parent=5 // pred_check_branch
        %155 = sbr.rel (%p152) target = $region12
      $region11: #{tpu_custom_call.1} parent=5 // pred_region
        %s156 = ssub.s32 %s17, 1
        // Predicated region
        $region13: #{tpu_custom_call.1} parent=11 // pred_check
          %p157 = pneg %p64
        $region14: #{tpu_custom_call.1} parent=11 // pred_check_branch
          %159 = sbr.rel (%p157) target = $region16
        $region15: #{tpu_custom_call.1} parent=11 // pred_region
          _
        $region16: #{tpu_custom_call.1} parent=11 // pred_fallthru
          _
      $region12: #{tpu_custom_call.1} parent=5 // pred_fallthru
        _
      %p160 = scmp.lt.s32.totalorder %s17, 4
      // Predicated region
      $region17: #{tpu_custom_call.1} parent=5 // pred_check
        %p161 = pneg %p160
      $region18: #{tpu_custom_call.1} parent=5 // pred_check_branch
        %163 = sbr.rel (%p161) target = $region20
      $region19: #{tpu_custom_call.1} parent=5 // pred_region
        // Predicated region
        $region21: #{tpu_custom_call.1} parent=19 // pred_check
          %p164 = pneg %p37
        $region22: #{tpu_custom_call.1} parent=19 // pred_check_branch
          %166 = sbr.rel (%p164) target = $region24
        $region23: #{tpu_custom_call.1} parent=19 // pred_region
          %s167 = smul.u32 16, %s17
          %p168 = scmp.lt.s32.totalorder %s167, 63
          %s169 = scalar_select %p168, %s167, 63
          %s170 = smul.addr %s169, 8
          %s171 = scalar_lea.vmem %s0, %s170
          %s172 = smul.u32 16, %s17
        $region24: #{tpu_custom_call.1} parent=19 // pred_fallthru
          _
      $region20: #{tpu_custom_call.1} parent=5 // pred_fallthru
        _
      %p173 = scmp.le.s32.totalorder 1, %s17
      %p174 = scmp.lt.s32.totalorder %s17, 5
      %p175 = pnand %p173, %p174
      %p176 = pneg %p175
      // Predicated region
      $region25: #{tpu_custom_call.1} parent=5 // pred_check
        _
      $region26: #{tpu_custom_call.1} parent=5 // pred_check_branch
        %178 = sbr.rel (%p175) target = $region28
      $region27: #{tpu_custom_call.1} parent=5 // pred_region
        %s179 = ssub.s32 %s17, 1
        %s180 = smul.u32 16, %s22
        %p181 = scmp.lt.s32.totalorder %s180, 63
        %s182 = scalar_select %p181, %s180, 63
        %s183 = smul.addr %s182, 8
        %s184 = scalar_lea.vmem %s0, %s183
        %p185 = pneg %p43
        %p186 = pneg %p40
        %p187 = pneg %p64
        %p188 = pneg %p61
        %p189 = pneg %p90
        %p190 = pneg %p87
        %s191 = smul.u32 16, %s22
        %p192 = scmp.lt.s32.totalorder %s191, 63
        %s193 = scalar_select %p192, %s191, 63
        %s194 = smul.addr %s193, 4
        %s195 = scalar_lea.vmem %s2, %s194
        %p196 = pneg %p116
        %p197 = pneg %p113
        %s198 = sand.u32 %s103, 1
        %s199 = scalar_lea.sflag [#allocation3], %s198
        %s200 = sand.u32 %s103, 1
        %s201 = scalar_lea.vmem [#allocation2], %s200
        %p202 = pneg %p142
        %p203 = pneg %p139
        %s204 = sand.u32 %s129, 1
        %s205 = scalar_lea.sflag [#allocation5], %s204
        %s206 = sand.u32 %s129, 1
        %s207 = scalar_lea.vmem [#allocation4], %s206
        %s208 = smul.u32 16, %s22
        %p209 = scmp.lt.s32.totalorder %s208, 63
        %s210 = scalar_select %p209, %s208, 63
        %s211 = smul.addr %s210, 8
        %s212 = scalar_lea.vmem %s0, %s211
        %s213 = smul.u32 16, %s22
        %s214 = smul.u32 16, %s22
        %p215 = scmp.lt.s32.totalorder %s214, 63
        %s216 = scalar_select %p215, %s214, 63
        %s217 = smul.addr %s216, 4
        %s218 = scalar_lea.vmem %s2, %s217
        %s219 = smul.u32 16, %s22
        %v221 = vld [vmem:[%s212] sm:$0xff]
        %v222 = vld [vmem:[%s212 + $0x8] sm:$0xff]
        %v223 = vld [vmem:[%s212 + $0x10] sm:$0xff]
        %v224 = vld [vmem:[%s212 + $0x18] sm:$0xff]
        %v225 = vld [vmem:[%s212 + $0x20] sm:$0xff]
        %v226 = vld [vmem:[%s212 + $0x28] sm:$0xff]
        %v227 = vld [vmem:[%s212 + $0x30] sm:$0xff]
        %v228 = vld [vmem:[%s212 + $0x38] sm:$0xff]
        %v229 = vld [vmem:[%s212 + $0x40] sm:$0xff]
        %v230 = vld [vmem:[%s212 + $0x48] sm:$0xff]
        %v231 = vld [vmem:[%s212 + $0x50] sm:$0xff]
        %v232 = vld [vmem:[%s212 + $0x58] sm:$0xff]
        %v233 = vld [vmem:[%s212 + $0x60] sm:$0xff]
        %v234 = vld [vmem:[%s212 + $0x68] sm:$0xff]
        %v235 = vld [vmem:[%s212 + $0x70] sm:$0xff]
        %v236 = vld [vmem:[%s212 + $0x78] sm:$0xff]
        %v237 = vpack.c.bf16 %v222, %v221
        %v238 = vpack.c.bf16 %v224, %v223
        %v239 = vpack.c.bf16 %v226, %v225
        %v240 = vpack.c.bf16 %v228, %v227
        %v241 = vpack.c.bf16 %v230, %v229
        %v242 = vpack.c.bf16 %v232, %v231
        %v243 = vpack.c.bf16 %v234, %v233
        %v244 = vpack.c.bf16 %v236, %v235
        %v245 = vld [vmem:[%s1] sm:$0xf]
        %v246 = vld [vmem:[%s1 + $0x4] sm:$0xf]
        %v249 = vunpack.c.l.b16 %v245
        %v250 = vunpack.c.l.b16 %v246
        %v251 = vpack.c.b16 %v250, %v249
        %vm253 = vcmask 130048
        %v255 = vsel %vm253, %v237, 0
        %v258 = vsel %vm253, %v238, 0
        %v261 = vsel %vm253, %v239, 0
        %v264 = vsel %vm253, %v240, 0
        %v267 = vsel %vm253, %v241, 0
        %v270 = vsel %vm253, %v242, 0
        %v273 = vsel %vm253, %v243, 0
        %v276 = vsel %vm253, %v244, 0
        %278 = vmatpush.bf16.msra.mxu0 0
        %279 = vmatpush.bf16.msra.mxu0 0
        %280 = vmatpush.bf16.msra.mxu0 0
        %281 = vmatpush.bf16.msra.mxu0 0
        %282 = vmatpush.bf16.msra.mxu0 0
        %283 = vmatpush.bf16.msra.mxu0 0
        %284 = vmatpush.bf16.msra.mxu0 0
        %285 = vmatpush.bf16.msra.mxu0 %v251
        %286 = vmatmul.bf16.gmra.mxu0 %v255
        %v287 = vpop.f32.mrf.mxu0
        %v288 = vadd.f32 0.0, %v287
        %v289 = vpop.f32.mrf.mxu0
        %v290 = vadd.f32 0.0, %v289
        %291 = vmatmul.bf16.gmra.mxu0 %v258
        %v292 = vpop.f32.mrf.mxu0
        %v293 = vadd.f32 0.0, %v292
        %v294 = vpop.f32.mrf.mxu0
        %v295 = vadd.f32 0.0, %v294
        %296 = vmatmul.bf16.gmra.mxu0 %v261
        %v297 = vpop.f32.mrf.mxu0
        %v298 = vadd.f32 0.0, %v297
        %v299 = vpop.f32.mrf.mxu0
        %v300 = vadd.f32 0.0, %v299
        %301 = vmatmul.bf16.gmra.mxu0 %v264
        %v302 = vpop.f32.mrf.mxu0
        %v303 = vadd.f32 0.0, %v302
        %v304 = vpop.f32.mrf.mxu0
        %v305 = vadd.f32 0.0, %v304
        %306 = vmatmul.bf16.gmra.mxu0 %v267
        %v307 = vpop.f32.mrf.mxu0
        %v308 = vadd.f32 0.0, %v307
        %v309 = vpop.f32.mrf.mxu0
        %v310 = vadd.f32 0.0, %v309
        %311 = vmatmul.bf16.gmra.mxu0 %v270
        %v312 = vpop.f32.mrf.mxu0
        %v313 = vadd.f32 0.0, %v312
        %v314 = vpop.f32.mrf.mxu0
        %v315 = vadd.f32 0.0, %v314
        %316 = vmatmul.bf16.gmra.mxu0 %v273
        %v317 = vpop.f32.mrf.mxu0
        %v318 = vadd.f32 0.0, %v317
        %v319 = vpop.f32.mrf.mxu0
        %v320 = vadd.f32 0.0, %v319
        %321 = vmatmul.bf16.gmra.mxu0 %v276
        %v322 = vpop.f32.mrf.mxu0
        %v323 = vadd.f32 0.0, %v322
        %v324 = vpop.f32.mrf.mxu0
        %v325 = vadd.f32 0.0, %v324
        %326 = vdwg.mxu0
        %v327 = vpack.c.bf16 %v288, %v288
        %v328 = vpack.c.bf16 %v290, %v290
        %v329 = vpack.c.bf16 %v293, %v293
        %v330 = vpack.c.bf16 %v295, %v295
        %v331 = vpack.c.bf16 %v298, %v298
        %v332 = vpack.c.bf16 %v300, %v300
        %v333 = vpack.c.bf16 %v303, %v303
        %v334 = vpack.c.bf16 %v305, %v305
        %v335 = vpack.c.bf16 %v308, %v308
        %v336 = vpack.c.bf16 %v310, %v310
        %v337 = vpack.c.bf16 %v313, %v313
        %v338 = vpack.c.bf16 %v315, %v315
        %v339 = vpack.c.bf16 %v318, %v318
        %v340 = vpack.c.bf16 %v320, %v320
        %v341 = vpack.c.bf16 %v323, %v323
        %v342 = vpack.c.bf16 %v325, %v325
        %vm343 = vcmask 60416
        %344 = vst.msk [vmem:[%s218] sm:$0xf] %vm343, %v327
        %345 = vst.msk [vmem:[%s218 + $0x4] sm:$0xf] %vm343, %v328
        %346 = vst.msk [vmem:[%s218 + $0x8] sm:$0xf] %vm343, %v329
        %347 = vst.msk [vmem:[%s218 + $0xc] sm:$0xf] %vm343, %v330
        %348 = vst.msk [vmem:[%s218 + $0x10] sm:$0xf] %vm343, %v331
        %349 = vst.msk [vmem:[%s218 + $0x14] sm:$0xf] %vm343, %v332
        %350 = vst.msk [vmem:[%s218 + $0x18] sm:$0xf] %vm343, %v333
        %351 = vst.msk [vmem:[%s218 + $0x1c] sm:$0xf] %vm343, %v334
        %352 = vst.msk [vmem:[%s218 + $0x20] sm:$0xf] %vm343, %v335
        %353 = vst.msk [vmem:[%s218 + $0x24] sm:$0xf] %vm343, %v336
        %354 = vst.msk [vmem:[%s218 + $0x28] sm:$0xf] %vm343, %v337
        %355 = vst.msk [vmem:[%s218 + $0x2c] sm:$0xf] %vm343, %v338
        %356 = vst.msk [vmem:[%s218 + $0x30] sm:$0xf] %vm343, %v339
        %357 = vst.msk [vmem:[%s218 + $0x34] sm:$0xf] %vm343, %v340
        %358 = vst.msk [vmem:[%s218 + $0x38] sm:$0xf] %vm343, %v341
        %359 = vst.msk [vmem:[%s218 + $0x3c] sm:$0xf] %vm343, %v342
        %vm360 = vcmask 64512
        %v361 = vsel %vm360, %v288, 0.0
        %v362 = vsel %vm360, %v290, 0.0
        %v363 = vadd.f32 %v361, %v362
        %v364 = vsel %vm360, %v293, 0.0
        %v365 = vadd.f32 %v363, %v364
        %v366 = vsel %vm360, %v295, 0.0
        %v367 = vadd.f32 %v365, %v366
        %v368 = vsel %vm360, %v298, 0.0
        %v369 = vadd.f32 %v367, %v368
        %v370 = vsel %vm360, %v300, 0.0
        %v371 = vadd.f32 %v369, %v370
        %v372 = vsel %vm360, %v303, 0.0
        %v373 = vadd.f32 %v371, %v372
        %v374 = vsel %vm360, %v305, 0.0
        %v375 = vadd.f32 %v373, %v374
        %v376 = vsel %vm360, %v308, 0.0
        %v377 = vadd.f32 %v375, %v376
        %v378 = vsel %vm360, %v310, 0.0
        %v379 = vadd.f32 %v377, %v378
        %v380 = vsel %vm360, %v313, 0.0
        %v381 = vadd.f32 %v379, %v380
        %v382 = vsel %vm360, %v315, 0.0
        %v383 = vadd.f32 %v381, %v382
        %v384 = vsel %vm360, %v318, 0.0
        %v385 = vadd.f32 %v383, %v384
        %v386 = vsel %vm360, %v320, 0.0
        %v387 = vadd.f32 %v385, %v386
        %v388 = vsel %vm360, %v323, 0.0
        %v389 = vadd.f32 %v387, %v388
        %v390 = vsel %vm360, %v325, 0.0
        %v391 = vadd.f32 %v389, %v390
        %v392 = vrot.slane %v391, 4
        %v393 = vadd.f32 %v391, %v392
        %v394 = vrot.slane %v393, 2
        %v395 = vadd.f32 %v393, %v394
        %v396 = vrot.slane %v395, 1
        %v397 = vadd.f32 %v395, %v396
        %vm398 = vcmask 57344
        %399 = vst.msk [vmem:[%s201] sm:$0x1] %vm398, %v397
        %v400 = vmul.f32 %v288, %v288
        %v401 = vmul.f32 %v290, %v290
        %v402 = vmul.f32 %v293, %v293
        %v403 = vmul.f32 %v295, %v295
        %v404 = vmul.f32 %v298, %v298
        %v405 = vmul.f32 %v300, %v300
        %v406 = vmul.f32 %v303, %v303
        %v407 = vmul.f32 %v305, %v305
        %v408 = vmul.f32 %v308, %v308
        %v409 = vmul.f32 %v310, %v310
        %v410 = vmul.f32 %v313, %v313
        %v411 = vmul.f32 %v315, %v315
        %v412 = vmul.f32 %v318, %v318
        %v413 = vmul.f32 %v320, %v320
        %v414 = vmul.f32 %v323, %v323
        %v415 = vmul.f32 %v325, %v325
        %v416 = vsel %vm360, %v400, 0.0
        %v417 = vsel %vm360, %v401, 0.0
        %v418 = vadd.f32 %v416, %v417
        %v419 = vsel %vm360, %v402, 0.0
        %v420 = vadd.f32 %v418, %v419
        %v421 = vsel %vm360, %v403, 0.0
        %v422 = vadd.f32 %v420, %v421
        %v423 = vsel %vm360, %v404, 0.0
        %v424 = vadd.f32 %v422, %v423
        %v425 = vsel %vm360, %v405, 0.0
        %v426 = vadd.f32 %v424, %v425
        %v427 = vsel %vm360, %v406, 0.0
        %v428 = vadd.f32 %v426, %v427
        %v429 = vsel %vm360, %v407, 0.0
        %v430 = vadd.f32 %v428, %v429
        %v431 = vsel %vm360, %v408, 0.0
        %v432 = vadd.f32 %v430, %v431
        %v433 = vsel %vm360, %v409, 0.0
        %v434 = vadd.f32 %v432, %v433
        %v435 = vsel %vm360, %v410, 0.0
        %v436 = vadd.f32 %v434, %v435
        %v437 = vsel %vm360, %v411, 0.0
        %v438 = vadd.f32 %v436, %v437
        %v439 = vsel %vm360, %v412, 0.0
        %v440 = vadd.f32 %v438, %v439
        %v441 = vsel %vm360, %v413, 0.0
        %v442 = vadd.f32 %v440, %v441
        %v443 = vsel %vm360, %v414, 0.0
        %v444 = vadd.f32 %v442, %v443
        %v445 = vsel %vm360, %v415, 0.0
        %v446 = vadd.f32 %v444, %v445
        %v447 = vrot.slane %v446, 4
        %v448 = vadd.f32 %v446, %v447
        %v449 = vrot.slane %v448, 2
        %v450 = vadd.f32 %v448, %v449
        %v451 = vrot.slane %v450, 1
        %v452 = vadd.f32 %v450, %v451
        %453 = vst.msk [vmem:[%s207] sm:$0x1] %vm398, %v452
        %s454 = smul.u32 16, %s22
        %p455 = scmp.lt.s32.totalorder %s454, 63
        %s456 = scalar_select %p455, %s454, 63
        %s457 = smul.addr %s456, 4
        %s458 = scalar_lea.vmem %s2, %s457
        %s459 = sand.u32 %s103, 1
        %s460 = scalar_lea.sflag [#allocation3], %s459
        %s461 = sand.u32 %s103, 1
        %s462 = scalar_lea.vmem [#allocation2], %s461
        %s463 = sand.u32 %s129, 1
        %s464 = scalar_lea.sflag [#allocation5], %s463
        %s465 = sand.u32 %s129, 1
        %s466 = scalar_lea.vmem [#allocation4], %s465
        // Predicated region
        $region29: #{tpu_custom_call.1} parent=27 // pred_check
          %p467 = pneg %p87
        $region30: #{tpu_custom_call.1} parent=27 // pred_check_branch
          %469 = sbr.rel (%p467) target = $region32
        $region31: #{tpu_custom_call.1} parent=27 // pred_region
          %s470 = smul.u32 16, %s22
        $region32: #{tpu_custom_call.1} parent=27 // pred_fallthru
          _
        // Predicated region
        $region33: #{tpu_custom_call.1} parent=27 // pred_check
          %p471 = pneg %p113
        $region34: #{tpu_custom_call.1} parent=27 // pred_check_branch
          %473 = sbr.rel (%p471) target = $region36
        $region35: #{tpu_custom_call.1} parent=27 // pred_region
          %475 = vsyncadd %s460, 0
          %s476 = scalar_lea.hbm %s3, %s22
          %s478 = sshll.u32 %s462, 4
          %s479 = int_to_ptr.vmem [resolvable:$true] %s478
          %s480 = sshll.u32 %s476, 4
          %s481 = int_to_ptr.hbm [resolvable:$true] %s480
          %483 = dma.vmem_to_hbm [thread:$0]  %s479, 16, %s481, %s460
        $region36: #{tpu_custom_call.1} parent=27 // pred_fallthru
          _
        // Predicated region
        $region37: #{tpu_custom_call.1} parent=27 // pred_check
          %p484 = pneg %p139
        $region38: #{tpu_custom_call.1} parent=27 // pred_check_branch
          %486 = sbr.rel (%p484) target = $region40
        $region39: #{tpu_custom_call.1} parent=27 // pred_region
          %488 = vsyncadd %s464, 0
          %s489 = scalar_lea.hbm %s4, %s22
          %s491 = sshll.u32 %s466, 4
          %s492 = int_to_ptr.vmem [resolvable:$true] %s491
          %s493 = sshll.u32 %s489, 4
          %s494 = int_to_ptr.hbm [resolvable:$true] %s493
          %496 = dma.vmem_to_hbm [thread:$0]  %s492, 16, %s494, %s464
        $region40: #{tpu_custom_call.1} parent=27 // pred_fallthru
          _
      $region28: #{tpu_custom_call.1} parent=5 // pred_fallthru
        _
      %p497 = scmp.le.s32.totalorder 2, %s17
      // Predicated region
      $region41: #{tpu_custom_call.1} parent=5 // pred_check
        %p498 = pneg %p497
      $region42: #{tpu_custom_call.1} parent=5 // pred_check_branch
        %500 = sbr.rel (%p498) target = $region44
      $region43: #{tpu_custom_call.1} parent=5 // pred_region
        %s501 = ssub.s32 %s17, 2
        // Predicated region
        $region45: #{tpu_custom_call.1} parent=43 // pred_check
          %p502 = pneg %p93
        $region46: #{tpu_custom_call.1} parent=43 // pred_check_branch
          %504 = sbr.rel (%p502) target = $region48
        $region47: #{tpu_custom_call.1} parent=43 // pred_region
          %s505 = smul.u32 16, %s23
          %p506 = scmp.lt.s32.totalorder %s505, 63
          %s507 = scalar_select %p506, %s505, 63
          %s508 = smul.addr %s507, 4
          %s509 = scalar_lea.vmem %s2, %s508
        $region48: #{tpu_custom_call.1} parent=43 // pred_fallthru
          _
        // Predicated region
        $region49: #{tpu_custom_call.1} parent=43 // pred_check
          %p510 = pneg %p119
        $region50: #{tpu_custom_call.1} parent=43 // pred_check_branch
          %512 = sbr.rel (%p510) target = $region52
        $region51: #{tpu_custom_call.1} parent=43 // pred_region
          %s513 = sand.u32 %s104, 1
          %s514 = scalar_lea.sflag [#allocation3], %s513
          %s515 = sand.u32 %s104, 1
          %s516 = scalar_lea.vmem [#allocation2], %s515
          %518 = dma.done %s514, 16
        $region52: #{tpu_custom_call.1} parent=43 // pred_fallthru
          _
        // Predicated region
        $region53: #{tpu_custom_call.1} parent=43 // pred_check
          %p519 = pneg %p145
        $region54: #{tpu_custom_call.1} parent=43 // pred_check_branch
          %521 = sbr.rel (%p519) target = $region56
        $region55: #{tpu_custom_call.1} parent=43 // pred_region
          %s522 = sand.u32 %s130, 1
          %s523 = scalar_lea.sflag [#allocation5], %s522
          %s524 = sand.u32 %s130, 1
          %s525 = scalar_lea.vmem [#allocation4], %s524
          %527 = dma.done %s523, 16
        $region56: #{tpu_custom_call.1} parent=43 // pred_fallthru
          _
      $region44: #{tpu_custom_call.1} parent=5 // pred_fallthru
        _
    $region6: #{tpu_custom_call.1} parent=1 // loop_footer
      %s21 = sadd.s32 1, %s17
    $region7: #{tpu_custom_call.1} parent=1 // loop_footer_branch
      %16 = sbr.rel target = $region3
    $region8: #{tpu_custom_call.1} parent=1 // loop_exit
      _
    %528 = vsyncpa [#allocation3], 1
    %s529 = scalar_lea.sflag [#allocation3], 1
    %530 = vsyncpa %s529, 1
    %531 = vsyncpa [#allocation5], 1
    %s532 = scalar_lea.sflag [#allocation5], 1
    %533 = vsyncpa %s532, 1

</llo_original>
